<compile_context>
chip_gen: v7x
topology: tpu7x:2x2x1
jax: 0.10.0
libtpu: 0.0.40
codegen_flags: <defaults>
</compile_context>

<pallas_src>
import jax
import jax.numpy as jnp
from jax.experimental import pallas as pl
from jax.experimental.pallas import tpu as pltpu


def _logits_to_predicate_kernel(x_ref, w_ref, b_ref, l_ref, o_ref):
    # Cast activations to bf16 on the VPU (hidden under the input DMA) so the
    # MXU runs at bf16 rate; accumulation and all elementwise math stay f32.
    x = x_ref[...].astype(jnp.bfloat16)
    logits = jnp.dot(x, w_ref[...], preferred_element_type=jnp.float32) \
        + b_ref[...]                                         # [TB, C] f32

    # Numerically stable softmax fused with the weighted-sum reduction:
    # `probs` is never materialized.
    m = jnp.max(logits, axis=1, keepdims=True)               # [TB, 1]
    e = jnp.exp(logits - m)                                  # [TB, C]  (EUP)
    l = l_ref[...].astype(jnp.float32)                       # [TB, C]
    num = jnp.sum(e * l, axis=1, keepdims=True)              # [TB, 1]
    den = jnp.sum(e, axis=1, keepdims=True)                  # [TB, 1]

    # Exact divide on a [TB, 1] column -> negligible cost, exact parity with
    # the reference softmax normalization.
    o_ref[...] = num / den


def _round_up(n, m):
    return ((n + m - 1) // m) * m


def logits_to_predicate(x, w, b, l, *, tb=4096):
    """x: [B, H], w: [H, C], b: [C], l: [B, C]  ->  out: [B] float32."""
    B, H = x.shape
    C = w.shape[1]

    # Weights are tiny and VMEM-resident: cast them once in the wrapper.
    w_bf = w.astype(jnp.bfloat16)
    b2 = b.reshape(1, C).astype(jnp.float32)

    # Streamed bytes/row in the arrays' *native* dtypes (no wrapper casts).
    x_bpr = x.dtype.itemsize * H
    l_bpr = l.dtype.itemsize * C

    # Generation-aware VMEM budget (v7x: 64 MiB physical; v5e/v6e: 128 MiB).
    try:
        vmem_cap = pltpu.get_tpu_info().vmem_capacity_bytes
    except Exception:
        vmem_cap = 64 * 1024 * 1024
    budget = (vmem_cap * 3) // 8          # ~24 MiB on v7x, ~48 MiB on v5e/v6e

    def _blk_bytes(t):
        # Double-buffered streamed blocks (x, l, out) + resident W/b.
        return 2 * t * (x_bpr + l_bpr + 4) + H * C * 2 + C * 4

    # Sublane granularity; keep >= 4 grid steps (when B allows) for megacore
    # sharding on v7x and for double-buffering overlap on all generations.
    tb = min(tb, max(8, _round_up(pl.cdiv(B, 4), 8)))
    tb = max(8, _round_up(tb, 8))
    while tb > 8 and _blk_bytes(tb) > budget:
        tb = max(8, _round_up(tb // 2, 8))

    # Ragged last block: no jnp.pad pass.  Rows are fully independent and
    # out-of-bounds rows' writes are discarded, so garbage tail rows are safe.
    grid = (pl.cdiv(B, tb),)

    cost = pl.CostEstimate(
        flops=2 * B * H * C,
        transcendentals=B * C,
        bytes_accessed=(B * x_bpr + w_bf.size * 2 + b2.size * 4
                        + B * l_bpr + B * 4),
    )

    out = pl.pallas_call(
        _logits_to_predicate_kernel,
        out_shape=jax.ShapeDtypeStruct((B, 1), jnp.float32),
        grid=grid,
        in_specs=[
            pl.BlockSpec((tb, H), lambda i: (i, 0)),   # x: streamed, native dtype
            pl.BlockSpec((H, C), lambda i: (0, 0)),    # W: VMEM-resident
            pl.BlockSpec((1, C), lambda i: (0, 0)),    # b: VMEM-resident
            pl.BlockSpec((tb, C), lambda i: (i, 0)),   # l: streamed, native dtype
        ],
        out_specs=pl.BlockSpec((tb, 1), lambda i: (i, 0)),
        compiler_params=pltpu.CompilerParams(
            dimension_semantics=("parallel",),
            vmem_limit_bytes=int(min(vmem_cap // 2,
                                     _blk_bytes(tb) + (4 << 20))),
        ),
        cost_estimate=cost,
    )(x, w_bf, b2, l)

    return out[:, 0]

    # TODO(synk): if num_classes grows to many hundreds, add a C grid axis
    # ("arbitrary") with online-softmax accumulation and tiled W instead of
    # keeping W fully VMEM-resident.


def reference(x, w, b, l):
    # Same numerics as the kernel (bf16 matmul operands, f32 accumulate,
    # f32 softmax, exact divide).
    logits = jnp.dot(
        x.astype(jnp.bfloat16), w.astype(jnp.bfloat16),
        preferred_element_type=jnp.float32,
    ) + b.astype(jnp.float32)
    probs = jax.nn.softmax(logits, axis=1)
    return jnp.sum(probs * l.astype(jnp.float32), axis=1)


if __name__ == "__main__":
    # B is not a multiple of the chosen tile -> exercises the ragged
    # last-block path and a multi-step grid (tb becomes 80 -> 4 steps).
    B, H, C = 300, 128, 16

    key = jax.random.PRNGKey(0)
    kx, kw, kb, kl = jax.random.split(key, 4)

    # Deterministic synthetic parameters for the logits model (Linear H -> C).
    x = jax.random.normal(kx, (B, H), dtype=jnp.float32)
    w = jax.random.normal(kw, (H, C), dtype=jnp.float32) * 0.1
    b = jax.random.normal(kb, (C,), dtype=jnp.float32) * 0.1

    # One-hot per-class weights `l` (typical LTN usage).  bf16 is exact for
    # one-hot and halves the l stream; the kernel accepts any dense l dtype.
    labels = jax.random.randint(kl, (B,), 0, C)
    l = jax.nn.one_hot(labels, C, dtype=jnp.bfloat16)

    out = jax.block_until_ready(logits_to_predicate(x, w, b, l))
    ref = reference(x, w, b, l)

    assert out.shape == (B,)
    assert jnp.allclose(out, ref, atol=3e-3, rtol=1e-2), (out, ref)
    print("KERNEL_OK")
</pallas_src>

<mosaic_0001>
module attributes {stable_mosaic.version = 11 : i64} {
  func.func @_logits_to_predicate_kernel(%arg0: i32, %arg1: memref<80x128xf32, #tpu.memory_space<vmem>>, %arg2: memref<128x16xbf16, #tpu.memory_space<vmem>>, %arg3: memref<1x16xf32, #tpu.memory_space<vmem>>, %arg4: memref<80x16xbf16, #tpu.memory_space<vmem>>, %arg5: memref<80x1xf32, #tpu.memory_space<vmem>>) attributes {dimension_semantics = [#tpu.dimension_semantics<parallel>], iteration_bounds = array<i64: 4>, scalar_prefetch = 0 : i64, scratch_operands = 0 : i64, tpu.core_type = #tpu.core_type<tc>, window_params = [{transform_indices = @transform_0, window_bounds = array<i64: 80, 128>}, {pipeline_mode = #tpu.pipeline_mode<synchronous>, transform_indices = @transform_1, window_bounds = array<i64: 128, 16>}, {pipeline_mode = #tpu.pipeline_mode<synchronous>, transform_indices = @transform_2, window_bounds = array<i64: 1, 16>}, {transform_indices = @transform_3, window_bounds = array<i64: 80, 16>}, {transform_indices = @transform_4, window_bounds = array<i64: 80, 1>}]} {
    %c0 = arith.constant 0 : index
    %c0_0 = arith.constant 0 : index
    %0 = vector.load %arg1[%c0, %c0_0] : memref<80x128xf32, #tpu.memory_space<vmem>>, vector<80x128xf32>
    %1 = arith.truncf %0 : vector<80x128xf32> to vector<80x128xbf16>
    %c0_1 = arith.constant 0 : index
    %c0_2 = arith.constant 0 : index
    %2 = vector.load %arg2[%c0_1, %c0_2] : memref<128x16xbf16, #tpu.memory_space<vmem>>, vector<128x16xbf16>
    %cst = arith.constant dense<0.000000e+00> : vector<80x16xf32>
    %3 = tpu.matmul %1, %2, %cst {dimension_numbers = #tpu.dot_dimension_numbers<[1], [0], [0], [1], [0, 0, 1, 1], [], []>} : vector<80x128xbf16>, vector<128x16xbf16>, vector<80x16xf32> -> vector<80x16xf32>
    %c0_3 = arith.constant 0 : index
    %c0_4 = arith.constant 0 : index
    %4 = vector.load %arg3[%c0_3, %c0_4] : memref<1x16xf32, #tpu.memory_space<vmem>>, vector<1x16xf32>
    %5 = vector.broadcast %4 : vector<1x16xf32> to vector<80x16xf32>
    %6 = arith.addf %3, %5 : vector<80x16xf32>
    %cst_5 = arith.constant dense<0xFF800000> : vector<80xf32>
    %7 = vector.multi_reduction <maximumf>, %6, %cst_5 [1] : vector<80x16xf32> to vector<80xf32>
    %8 = vector.shape_cast %7 : vector<80xf32> to vector<80x1xf32>
    %9 = vector.broadcast %8 : vector<80x1xf32> to vector<80x16xf32>
    %10 = arith.subf %6, %9 : vector<80x16xf32>
    %11 = math.exp %10 : vector<80x16xf32>
    %c0_6 = arith.constant 0 : index
    %c0_7 = arith.constant 0 : index
    %12 = vector.load %arg4[%c0_6, %c0_7] : memref<80x16xbf16, #tpu.memory_space<vmem>>, vector<80x16xbf16>
    %13 = arith.extf %12 : vector<80x16xbf16> to vector<80x16xf32>
    %14 = arith.mulf %11, %13 : vector<80x16xf32>
    %cst_8 = arith.constant dense<0.000000e+00> : vector<80xf32>
    %15 = vector.multi_reduction <add>, %14, %cst_8 [1] : vector<80x16xf32> to vector<80xf32>
    %16 = vector.shape_cast %15 : vector<80xf32> to vector<80x1xf32>
    %cst_9 = arith.constant dense<0.000000e+00> : vector<80xf32>
    %17 = vector.multi_reduction <add>, %11, %cst_9 [1] : vector<80x16xf32> to vector<80xf32>
    %18 = vector.shape_cast %17 : vector<80xf32> to vector<80x1xf32>
    %19 = arith.divf %16, %18 : vector<80x1xf32>
    %c0_10 = arith.constant 0 : index
    %c0_11 = arith.constant 0 : index
    %20 = vector.load %arg5[%c0_10, %c0_11] : memref<80x1xf32, #tpu.memory_space<vmem>>, vector<80x1xf32>
    tpu.vector_store %arg5[%c0_10, %c0_11], %19 {strides = array<i32>} : memref<80x1xf32, #tpu.memory_space<vmem>>, vector<80x1xf32>,
    return
  }
  func.func @transform_0(%arg0: i32) -> (i32, i32) {
    %c0_i32 = arith.constant 0 : i32
    %c0_i32_0 = arith.constant 0 : i32
    return %arg0, %c0_i32 : i32, i32
  }
  func.func @transform_1(%arg0: i32) -> (i32, i32) {
    %c0_i32 = arith.constant 0 : i32
    %c0_i32_0 = arith.constant 0 : i32
    %c0_i32_1 = arith.constant 0 : i32
    return %c0_i32, %c0_i32_0 : i32, i32
  }
  func.func @transform_2(%arg0: i32) -> (i32, i32) {
    %c0_i32 = arith.constant 0 : i32
    %c0_i32_0 = arith.constant 0 : i32
    %c0_i32_1 = arith.constant 0 : i32
    return %c0_i32, %c0_i32_0 : i32, i32
  }
  func.func @transform_3(%arg0: i32) -> (i32, i32) {
    %c0_i32 = arith.constant 0 : i32
    %c0_i32_0 = arith.constant 0 : i32
    return %arg0, %c0_i32 : i32, i32
  }
  func.func @transform_4(%arg0: i32) -> (i32, i32) {
    %c0_i32 = arith.constant 0 : i32
    %c0_i32_0 = arith.constant 0 : i32
    return %arg0, %c0_i32 : i32, i32
  }
}

</mosaic_0001>

<llo_original>
// kernel: tpu_custom_call.1
$region0: #{tpu_custom_call.1}
  #allocation0 [shape = 'u32[]', space=smem, size = 0x4, offset = 0x4, fixed_abs, tag = 'smem constant byte address 0x4 - core index']
  #allocation1 [shape = 'u32[144,128]{1,0:T(1,128)}', space=vmem, size = 0x12000, scoped, tag = 'internal scratch']
  %s0 = inlined_call_operand.hbm [shape: f32[300,128], index: 0, kind: input, shape index: {}]
  %s1 = inlined_call_operand.vmem [shape: bf16[128,16], index: 1, kind: input, shape index: {}]
  %s2 = inlined_call_operand.vmem [shape: f32[1,16], index: 2, kind: input, shape index: {}]
  %s3 = inlined_call_operand.vmem [shape: bf16[300,16], index: 3, kind: input, shape index: {}]
  %s4 = inlined_call_operand.vmem [shape: f32[300,1], index: 4, kind: output, shape index: {}]
  %s5 = sld [smem:[#allocation0]]
  $region101: #{tpu_custom_call.1} parent=0
    _
  %s7 = ssub.s32 1, %s5
  %s8 = scalar_select 0, %s7, %s5
  $region1: #{tpu_custom_call.1} parent=0
    #allocation2 [shape = 'u8[81920]{0}', space=vmem, size = 0x14000, scoped, tag = 'input window, operand 0']
    #allocation3 [shape = 's32[2]{0}', space=sflag, size = 0x8, scoped, tag = 'scoped memory for tpu_custom_call.1']
    #allocation4 [shape = 'u8[81920]{0}', space=vmem, size = 0x14000, scoped, tag = 'output window, operand 0']
    %9 = vsyncpa [#allocation3], 0
    %s10 = scalar_lea.sflag [#allocation3], 1
    %11 = vsyncpa %s10, 0
    loop: start=0, step=1, limit=6
    $region2: #{tpu_custom_call.1} parent=1 // loop_pre_header
      _
    $region3: #{tpu_custom_call.1} parent=1 // loop_header
      %s13 = sphi 0, %s17
      %p14 = scmp.ge.s32.totalorder %s13, 6
      %s23 = sphi 0, %s25
      %s26 = sphi 0, %s23
      %s27 = sphi 0, %s26
      %s43 = sphi 0, %s27
      %s47 = sphi 0, %s47
      %s49 = sphi 0, %s47
      %s50 = sphi 0, %s49
      %s64 = sphi 0, %s50
      %s68 = sphi 0, %s68
      %s70 = sphi 0, %s68
      %s71 = sphi 0, %s70
      %s85 = sphi 0, %s71
      %s91 = sphi 0, %s93
      %s94 = sphi 0, %s91
      %s95 = sphi 0, %s94
      %s111 = sphi 0, %s95
      %s117 = sphi 0, %s119
      %s120 = sphi 0, %s117
      %s121 = sphi 0, %s120
      %s137 = sphi 0, %s121
    $region4: #{tpu_custom_call.1} parent=1 // loop_header_branch
      %16 = sbr.rel (%p14) target = $region8
    $region5: #{tpu_custom_call.1} parent=1 // loop_body
      %s18 = ssub.s32 %s13, 1
      %s19 = ssub.s32 %s13, 2
      %s20 = sadd.s32 %s13, 1
      %s21 = ssub.s32 %s13, %s20
      %p22 = scmp.eq.s32.totalorder %s21, 0
      %s24 = sadd.s32 %s23, 1
      %s25 = scalar_select %p22, %s23, %s24
      %p28 = pneg %p22
      %p29 = scmp.eq.s32.totalorder %s13, 3
      %p30 = por %p28, %p29
      %p31 = scmp.ne.s32.totalorder %s23, %s26
      %p32 = scmp.eq.s32.totalorder %s13, 0
      %p33 = por %p31, %p32
      %p34 = scmp.ne.s32.totalorder %s23, %s26
      %p35 = scmp.eq.s32.totalorder %s18, 3
      %p36 = por %p34, %p35
      %p37 = scmp.ne.s32.totalorder %s26, %s27
      %p38 = scmp.eq.s32.totalorder %s18, 0
      %p39 = por %p37, %p38
      %p40 = scmp.ne.s32.totalorder %s26, %s27
      %p41 = scmp.eq.s32.totalorder %s19, 3
      %p42 = por %p40, %p41
      %p44 = scmp.ne.s32.totalorder %s27, %s43
      %p45 = scmp.eq.s32.totalorder %s19, 0
      %p46 = por %p44, %p45
      %s48 = sadd.s32 %s47, 1
      %p51 = scmp.eq.s32.totalorder %s13, 3
      %p52 = scmp.ne.s32.totalorder %s47, %s49
      %p53 = scmp.eq.s32.totalorder %s13, 0
      %p54 = por %p52, %p53
      %p55 = scmp.ne.s32.totalorder %s47, %s49
      %p56 = scmp.eq.s32.totalorder %s18, 3
      %p57 = por %p55, %p56
      %p58 = scmp.ne.s32.totalorder %s49, %s50
      %p59 = scmp.eq.s32.totalorder %s18, 0
      %p60 = por %p58, %p59
      %p61 = scmp.ne.s32.totalorder %s49, %s50
      %p62 = scmp.eq.s32.totalorder %s19, 3
      %p63 = por %p61, %p62
      %p65 = scmp.ne.s32.totalorder %s50, %s64
      %p66 = scmp.eq.s32.totalorder %s19, 0
      %p67 = por %p65, %p66
      %s69 = sadd.s32 %s68, 1
      %p72 = scmp.eq.s32.totalorder %s13, 3
      %p73 = scmp.ne.s32.totalorder %s68, %s70
      %p74 = scmp.eq.s32.totalorder %s13, 0
      %p75 = por %p73, %p74
      %p76 = scmp.ne.s32.totalorder %s68, %s70
      %p77 = scmp.eq.s32.totalorder %s18, 3
      %p78 = por %p76, %p77
      %p79 = scmp.ne.s32.totalorder %s70, %s71
      %p80 = scmp.eq.s32.totalorder %s18, 0
      %p81 = por %p79, %p80
      %p82 = scmp.ne.s32.totalorder %s70, %s71
      %p83 = scmp.eq.s32.totalorder %s19, 3
      %p84 = por %p82, %p83
      %p86 = scmp.ne.s32.totalorder %s71, %s85
      %p87 = scmp.eq.s32.totalorder %s19, 0
      %p88 = por %p86, %p87
      %s89 = ssub.s32 %s13, %s20
      %p90 = scmp.eq.s32.totalorder %s89, 0
      %s92 = sadd.s32 %s91, 1
      %s93 = scalar_select %p90, %s91, %s92
      %p96 = pneg %p90
      %p97 = scmp.eq.s32.totalorder %s13, 3
      %p98 = por %p96, %p97
      %p99 = scmp.ne.s32.totalorder %s91, %s94
      %p100 = scmp.eq.s32.totalorder %s13, 0
      %p101 = por %p99, %p100
      %p102 = scmp.ne.s32.totalorder %s91, %s94
      %p103 = scmp.eq.s32.totalorder %s18, 3
      %p104 = por %p102, %p103
      %p105 = scmp.ne.s32.totalorder %s94, %s95
      %p106 = scmp.eq.s32.totalorder %s18, 0
      %p107 = por %p105, %p106
      %p108 = scmp.ne.s32.totalorder %s94, %s95
      %p109 = scmp.eq.s32.totalorder %s19, 3
      %p110 = por %p108, %p109
      %p112 = scmp.ne.s32.totalorder %s95, %s111
      %p113 = scmp.eq.s32.totalorder %s19, 0
      %p114 = por %p112, %p113
      %s115 = ssub.s32 %s13, %s20
      %p116 = scmp.eq.s32.totalorder %s115, 0
      %s118 = sadd.s32 %s117, 1
      %s119 = scalar_select %p116, %s117, %s118
      %p122 = pneg %p116
      %p123 = scmp.eq.s32.totalorder %s13, 3
      %p124 = por %p122, %p123
      %p125 = scmp.ne.s32.totalorder %s117, %s120
      %p126 = scmp.eq.s32.totalorder %s13, 0
      %p127 = por %p125, %p126
      %p128 = scmp.ne.s32.totalorder %s117, %s120
      %p129 = scmp.eq.s32.totalorder %s18, 3
      %p130 = por %p128, %p129
      %p131 = scmp.ne.s32.totalorder %s120, %s121
      %p132 = scmp.eq.s32.totalorder %s18, 0
      %p133 = por %p131, %p132
      %p134 = scmp.ne.s32.totalorder %s120, %s121
      %p135 = scmp.eq.s32.totalorder %s19, 3
      %p136 = por %p134, %p135
      %p138 = scmp.ne.s32.totalorder %s121, %s137
      %p139 = scmp.eq.s32.totalorder %s19, 0
      %p140 = por %p138, %p139
      %p141 = scmp.le.s32.totalorder 1, %s13
      %p142 = scmp.lt.s32.totalorder %s13, 5
      %p143 = pnand %p141, %p142
      %p144 = pneg %p143
      // Predicated region
      $region9: #{tpu_custom_call.1} parent=5 // pred_check
        _
      $region10: #{tpu_custom_call.1} parent=5 // pred_check_branch
        %146 = sbr.rel (%p143) target = $region12
      $region11: #{tpu_custom_call.1} parent=5 // pred_region
        %s147 = ssub.s32 %s13, 1
        // Predicated region
        $region13: #{tpu_custom_call.1} parent=11 // pred_check
          %p148 = pneg %p60
        $region14: #{tpu_custom_call.1} parent=11 // pred_check_branch
          %150 = sbr.rel (%p148) target = $region16
        $region15: #{tpu_custom_call.1} parent=11 // pred_region
          _
        $region16: #{tpu_custom_call.1} parent=11 // pred_fallthru
          _
        // Predicated region
        $region17: #{tpu_custom_call.1} parent=11 // pred_check
          %p151 = pneg %p81
        $region18: #{tpu_custom_call.1} parent=11 // pred_check_branch
          %153 = sbr.rel (%p151) target = $region20
        $region19: #{tpu_custom_call.1} parent=11 // pred_region
          _
        $region20: #{tpu_custom_call.1} parent=11 // pred_fallthru
          _
      $region12: #{tpu_custom_call.1} parent=5 // pred_fallthru
        _
      %p154 = scmp.lt.s32.totalorder %s13, 4
      // Predicated region
      $region21: #{tpu_custom_call.1} parent=5 // pred_check
        %p155 = pneg %p154
      $region22: #{tpu_custom_call.1} parent=5 // pred_check_branch
        %157 = sbr.rel (%p155) target = $region24
      $region23: #{tpu_custom_call.1} parent=5 // pred_region
        // Predicated region
        $region25: #{tpu_custom_call.1} parent=23 // pred_check
          %p158 = pneg %p33
        $region26: #{tpu_custom_call.1} parent=23 // pred_check_branch
          %160 = sbr.rel (%p158) target = $region28
        $region27: #{tpu_custom_call.1} parent=23 // pred_region
          %s161 = sand.u32 %s23, 1
          %s162 = scalar_lea.sflag [#allocation3], %s161
          %s163 = sand.u32 %s23, 1
          %s164 = smul.addr %s163, 80
          %s165 = scalar_lea.vmem [#allocation2], %s164
          %s166 = smul.u32 10, %s13
          %s167 = ssub.s32 38, %s166
          %p168 = scmp.lt.s32.totalorder %s167, 10
          %s169 = scalar_select %p168, %s167, 10
          %s170 = smul.u32 128, %s169
          %s172 = ssub.s32 1280, %s170
          %173 = vsyncadd %s162, %s172
          %p174 = scmp.ne.s32.totalorder 0, %s170
          %s175 = smul.addr %s166, 128
          %s176 = scalar_lea.hbm %s0, %s175
          %s177 = smul.u32 8, %s169
          %s178 = sshll.u32 %s165, 4
          %s179 = int_to_ptr.vmem [resolvable:$true] %s178
          %s180 = sshll.u32 %s177, 4
          %184 = dma.hbm_to_vmem [thread:$0]  (%p174), %s176, %s180, %s179, %s162, 128, 128, 8
        $region28: #{tpu_custom_call.1} parent=23 // pred_fallthru
          _
        // Predicated region
        $region29: #{tpu_custom_call.1} parent=23 // pred_check
          %p185 = pneg %p101
        $region30: #{tpu_custom_call.1} parent=23 // pred_check_branch
          %187 = sbr.rel (%p185) target = $region32
        $region31: #{tpu_custom_call.1} parent=23 // pred_region
          %s188 = smul.u32 10, %s13
          %s189 = ssub.s32 38, %s188
          %p190 = scmp.lt.s32.totalorder %s189, 10
          %s191 = scalar_select %p190, %s189, 10
          %s192 = smul.u32 64, %s191
          %p193 = scmp.lt.s32.totalorder %s188, 37
          %s194 = scalar_select %p193, %s188, 37
          %s195 = smul.addr %s194, 4
          %s196 = scalar_lea.vmem %s3, %s195
          %s197 = smul.u32 10, %s13
          %s198 = ssub.s32 38, %s197
          %p199 = scmp.lt.s32.totalorder %s198, 10
          %s200 = scalar_select %p199, %s198, 10
          %s201 = smul.u32 64, %s200
        $region32: #{tpu_custom_call.1} parent=23 // pred_fallthru
          _
      $region24: #{tpu_custom_call.1} parent=5 // pred_fallthru
        _
      %p202 = scmp.le.s32.totalorder 1, %s13
      %p203 = scmp.lt.s32.totalorder %s13, 5
      %p204 = pnand %p202, %p203
      %p205 = pneg %p204
      // Predicated region
      $region33: #{tpu_custom_call.1} parent=5 // pred_check
        _
      $region34: #{tpu_custom_call.1} parent=5 // pred_check_branch
        %207 = sbr.rel (%p204) target = $region36
      $region35: #{tpu_custom_call.1} parent=5 // pred_region
        %s208 = ssub.s32 %s13, 1
        %s209 = sand.u32 %s26, 1
        %s210 = scalar_lea.sflag [#allocation3], %s209
        %s211 = sand.u32 %s26, 1
        %s212 = smul.addr %s211, 80
        %s213 = scalar_lea.vmem [#allocation2], %s212
        // Predicated region
        $region37: #{tpu_custom_call.1} parent=35 // pred_check
          %p214 = pneg %p39
        $region38: #{tpu_custom_call.1} parent=35 // pred_check_branch
          %216 = sbr.rel (%p214) target = $region40
        $region39: #{tpu_custom_call.1} parent=35 // pred_region
          %217 = dma.done %s210, 1280
        $region40: #{tpu_custom_call.1} parent=35 // pred_fallthru
          _
        %s218 = sand.u32 %s26, 1
        %s219 = scalar_lea.sflag [#allocation3], %s218
        %s220 = sand.u32 %s26, 1
        %s221 = smul.addr %s220, 80
        %s222 = scalar_lea.vmem [#allocation2], %s221
        %p223 = pneg %p39
        %p224 = pneg %p36
        %p225 = pneg %p60
        %p226 = pneg %p57
        %p227 = pneg %p81
        %p228 = pneg %p78
        %s229 = smul.u32 10, %s18
        %s230 = ssub.s32 38, %s229
        %p231 = scmp.lt.s32.totalorder %s230, 10
        %s232 = scalar_select %p231, %s230, 10
        %s233 = smul.u32 64, %s232
        %p234 = scmp.lt.s32.totalorder %s229, 37
        %s235 = scalar_select %p234, %s229, 37
        %s236 = smul.addr %s235, 4
        %s237 = scalar_lea.vmem %s3, %s236
        %p238 = pneg %p107
        %p239 = pneg %p104
        %p240 = pneg %p133
        %p241 = pneg %p130
        %s242 = sand.u32 %s120, 1
        %s243 = sand.u32 %s120, 1
        %s244 = smul.addr %s243, 80
        %s245 = scalar_lea.vmem [#allocation4], %s244
        %s246 = smul.u32 10, %s18
        %s247 = ssub.s32 38, %s246
        %p248 = scmp.lt.s32.totalorder %s247, 10
        %s249 = scalar_select %p248, %s247, 10
        %s250 = smul.u32 128, %s249
        %s251 = smul.u32 10, %s18
        %s252 = ssub.s32 38, %s251
        %p253 = scmp.lt.s32.totalorder %s252, 10
        %s254 = scalar_select %p253, %s252, 10
        %s255 = smul.u32 64, %s254
        %p256 = scmp.lt.s32.totalorder %s251, 37
        %s257 = scalar_select %p256, %s251, 37
        %s258 = smul.addr %s257, 4
        %s259 = scalar_lea.vmem %s3, %s258
        %s260 = smul.u32 10, %s18
        %s261 = ssub.s32 38, %s260
        %p262 = scmp.lt.s32.totalorder %s261, 10
        %s263 = scalar_select %p262, %s261, 10
        %s264 = smul.u32 64, %s263
        %s265 = smul.u32 10, %s18
        %s266 = ssub.s32 38, %s265
        %p267 = scmp.lt.s32.totalorder %s266, 10
        %s268 = scalar_select %p267, %s266, 10
        %s269 = smul.u32 128, %s268
        %v271 = vld [vmem:[%s213] sm:$0xff]
        %v272 = vld [vmem:[%s213 + $0x8] sm:$0xff]
        %v273 = vld [vmem:[%s213 + $0x10] sm:$0xff]
        %v274 = vld [vmem:[%s213 + $0x18] sm:$0xff]
        %v275 = vld [vmem:[%s213 + $0x20] sm:$0xff]
        %v276 = vld [vmem:[%s213 + $0x28] sm:$0xff]
        %v277 = vld [vmem:[%s213 + $0x30] sm:$0xff]
        %v278 = vld [vmem:[%s213 + $0x38] sm:$0xff]
        %v279 = vld [vmem:[%s213 + $0x40] sm:$0xff]
        %v280 = vld [vmem:[%s213 + $0x48] sm:$0xff]
        %v281 = vpack.c.bf16 %v272, %v271
        %v282 = vpack.c.bf16 %v274, %v273
        %v283 = vpack.c.bf16 %v276, %v275
        %v284 = vpack.c.bf16 %v278, %v277
        %v285 = vpack.c.bf16 %v280, %v279
        %v286 = vld [vmem:[%s1] sm:$0xf]
        %v287 = vld [vmem:[%s1 + $0x4] sm:$0xf]
        %v288 = vld [vmem:[%s1 + $0x8] sm:$0xf]
        %v289 = vld [vmem:[%s1 + $0xc] sm:$0xf]
        %v290 = vld [vmem:[%s1 + $0x10] sm:$0xf]
        %v291 = vld [vmem:[%s1 + $0x14] sm:$0xf]
        %v292 = vld [vmem:[%s1 + $0x18] sm:$0xf]
        %v293 = vld [vmem:[%s1 + $0x1c] sm:$0xf]
        %v294 = vld [vmem:[%s1 + $0x20] sm:$0xf]
        %v295 = vld [vmem:[%s1 + $0x24] sm:$0xf]
        %v296 = vld [vmem:[%s1 + $0x28] sm:$0xf]
        %v297 = vld [vmem:[%s1 + $0x2c] sm:$0xf]
        %v298 = vld [vmem:[%s1 + $0x30] sm:$0xf]
        %v299 = vld [vmem:[%s1 + $0x34] sm:$0xf]
        %v300 = vld [vmem:[%s1 + $0x38] sm:$0xf]
        %v301 = vld [vmem:[%s1 + $0x3c] sm:$0xf]
        %v302 = vld [vmem:[%s2] sm:$0x1]
        %v304 = vlaneseq
        %v305 = vshrl.u32 %v304, 7
        %v306 = vsub.s32 0, %v305
        %v307 = vrot.slane %v302, %v306
        %v325 = vunpack.c.l.b16 %v286
        %v326 = vunpack.c.l.b16 %v287
        %v327 = vunpack.c.l.b16 %v288
        %v328 = vunpack.c.l.b16 %v289
        %v329 = vunpack.c.l.b16 %v290
        %v330 = vunpack.c.l.b16 %v291
        %v331 = vunpack.c.l.b16 %v292
        %v332 = vunpack.c.l.b16 %v293
        %v333 = vunpack.c.l.b16 %v294
        %v334 = vunpack.c.l.b16 %v295
        %v335 = vunpack.c.l.b16 %v296
        %v336 = vunpack.c.l.b16 %v297
        %v337 = vunpack.c.l.b16 %v298
        %v338 = vunpack.c.l.b16 %v299
        %v339 = vunpack.c.l.b16 %v300
        %v340 = vunpack.c.l.b16 %v301
        %v341 = vpack.c.b16 %v326, %v325
        %v342 = vpack.c.b16 %v328, %v327
        %v343 = vpack.c.b16 %v330, %v329
        %v344 = vpack.c.b16 %v332, %v331
        %v345 = vpack.c.b16 %v334, %v333
        %v346 = vpack.c.b16 %v336, %v335
        %v347 = vpack.c.b16 %v338, %v337
        %v348 = vpack.c.b16 %v340, %v339
        %357 = vmatprep.subr.bf16.mxu0 0
        %358 = vmatpush1.bf16.msra.mxu0 %v341
        %359 = vmatprep.subr.bf16.mxu0 0
        %360 = vmatpush1.bf16.msra.mxu0 %v342
        %361 = vmatprep.subr.bf16.mxu0 0
        %362 = vmatpush1.bf16.msra.mxu0 %v343
        %363 = vmatprep.subr.bf16.mxu0 0
        %364 = vmatpush1.bf16.msra.mxu0 %v344
        %365 = vmatprep.subr.bf16.mxu0 0
        %366 = vmatpush1.bf16.msra.mxu0 %v345
        %367 = vmatprep.subr.bf16.mxu0 0
        %368 = vmatpush1.bf16.msra.mxu0 %v346
        %369 = vmatprep.subr.bf16.mxu0 0
        %370 = vmatpush1.bf16.msra.mxu0 %v347
        %371 = vmatprep.subr.bf16.mxu0 0
        %372 = vmatpush1.bf16.msra.mxu0 %v348
        %373 = vmatprep.subr.bf16.mxu0 0
        %374 = vmatpush1.bf16.msra.mxu0 0
        %375 = vmatprep.subr.bf16.mxu0 0
        %376 = vmatpush1.bf16.msra.mxu0 0
        %377 = vmatprep.subr.bf16.mxu0 0
        %378 = vmatpush1.bf16.msra.mxu0 0
        %379 = vmatprep.subr.bf16.mxu0 0
        %380 = vmatpush1.bf16.msra.mxu0 0
        %381 = vmatprep.subr.bf16.mxu0 0
        %382 = vmatpush1.bf16.msra.mxu0 0
        %383 = vmatprep.subr.bf16.mxu0 0
        %384 = vmatpush1.bf16.msra.mxu0 0
        %385 = vmatprep.subr.bf16.mxu0 0
        %386 = vmatpush1.bf16.msra.mxu0 0
        %387 = vmatprep.subr.bf16.mxu0 0
        %388 = vmatpush1.bf16.msra.mxu0 0
        %389 = vmatprep.mubr.bf16.mxu0 0
        %390 = vmatmul.mubr.bf16.gmra.mrb[0].mxu0 %v281
        %v391 = vpop.f32.mrb[0].mxu0
        %v392 = vadd.f32 %v307, %v391
        %v393 = vpop.f32.mrb[0].mxu0
        %v394 = vpop.f32.mrb[0].mxu0
        %v395 = vadd.f32 %v307, %v394
        %v396 = vpop.f32.mrb[0].mxu0
        %397 = vmatprep.mubr.bf16.mxu0 0
        %398 = vmatmul.mubr.bf16.gmra.mrb[0].mxu0 %v282
        %v399 = vpop.f32.mrb[0].mxu0
        %v400 = vadd.f32 %v307, %v399
        %v401 = vpop.f32.mrb[0].mxu0
        %v402 = vpop.f32.mrb[0].mxu0
        %v403 = vadd.f32 %v307, %v402
        %v404 = vpop.f32.mrb[0].mxu0
        %405 = vmatprep.mubr.bf16.mxu0 0
        %406 = vmatmul.mubr.bf16.gmra.mrb[0].mxu0 %v283
        %v407 = vpop.f32.mrb[0].mxu0
        %v408 = vadd.f32 %v307, %v407
        %v409 = vpop.f32.mrb[0].mxu0
        %v410 = vpop.f32.mrb[0].mxu0
        %v411 = vadd.f32 %v307, %v410
        %v412 = vpop.f32.mrb[0].mxu0
        %413 = vmatprep.mubr.bf16.mxu0 0
        %414 = vmatmul.mubr.bf16.gmra.mrb[0].mxu0 %v284
        %v415 = vpop.f32.mrb[0].mxu0
        %v416 = vadd.f32 %v307, %v415
        %v417 = vpop.f32.mrb[0].mxu0
        %v418 = vpop.f32.mrb[0].mxu0
        %v419 = vadd.f32 %v307, %v418
        %v420 = vpop.f32.mrb[0].mxu0
        %421 = vmatprep.mubr.bf16.mxu0 0
        %422 = vmatmul.mubr.bf16.gmra.mrb[0].mxu0 %v285
        %v423 = vpop.f32.mrb[0].mxu0
        %v424 = vadd.f32 %v307, %v423
        %v425 = vpop.f32.mrb[0].mxu0
        %v426 = vpop.f32.mrb[0].mxu0
        %v427 = vadd.f32 %v307, %v426
        %v428 = vpop.f32.mrb[0].mxu0
        %429 = vdwg.mxu0
        %vm430 = vcmask 130048
        %v431 = vsel %vm430, %v392, -inf
        %432 = vmax.xlane.f32.xlu0 %v431
        %v433 = vpop.xlane.xlu0 %432
        %v434 = vsel %vm430, %v395, -inf
        %435 = vmax.xlane.f32.xlu0 %v434
        %v436 = vpop.xlane.xlu0 %435
        %v437 = vsel %vm430, %v400, -inf
        %438 = vmax.xlane.f32.xlu0 %v437
        %v439 = vpop.xlane.xlu0 %438
        %v440 = vsel %vm430, %v403, -inf
        %441 = vmax.xlane.f32.xlu0 %v440
        %v442 = vpop.xlane.xlu0 %441
        %v443 = vsel %vm430, %v408, -inf
        %444 = vmax.xlane.f32.xlu0 %v443
        %v445 = vpop.xlane.xlu0 %444
        %v446 = vsel %vm430, %v411, -inf
        %447 = vmax.xlane.f32.xlu0 %v446
        %v448 = vpop.xlane.xlu0 %447
        %v449 = vsel %vm430, %v416, -inf
        %450 = vmax.xlane.f32.xlu0 %v449
        %v451 = vpop.xlane.xlu0 %450
        %v452 = vsel %vm430, %v419, -inf
        %453 = vmax.xlane.f32.xlu0 %v452
        %v454 = vpop.xlane.xlu0 %453
        %v455 = vsel %vm430, %v424, -inf
        %456 = vmax.xlane.f32.xlu0 %v455
        %v457 = vpop.xlane.xlu0 %456
        %v458 = vsel %vm430, %v427, -inf
        %459 = vmax.xlane.f32.xlu0 %v458
        %v460 = vpop.xlane.xlu0 %459
        %v461 = vsub.f32 %v392, %v433
        %v462 = vsub.f32 %v395, %v436
        %v463 = vsub.f32 %v400, %v439
        %v464 = vsub.f32 %v403, %v442
        %v465 = vsub.f32 %v408, %v445
        %v466 = vsub.f32 %v411, %v448
        %v467 = vsub.f32 %v416, %v451
        %v468 = vsub.f32 %v419, %v454
        %v469 = vsub.f32 %v424, %v457
        %v470 = vsub.f32 %v427, %v460
        %v471 = vmul.f32 %v461, 1.442695
        %v472 = vpow.pop %v471
        %v473 = vmul.f32 %v462, 1.442695
        %v474 = vpow.pop %v473
        %v475 = vmul.f32 %v463, 1.442695
        %v476 = vpow.pop %v475
        %v477 = vmul.f32 %v464, 1.442695
        %v478 = vpow.pop %v477
        %v479 = vmul.f32 %v465, 1.442695
        %v480 = vpow.pop %v479
        %v481 = vmul.f32 %v466, 1.442695
        %v482 = vpow.pop %v481
        %v483 = vmul.f32 %v467, 1.442695
        %v484 = vpow.pop %v483
        %v485 = vmul.f32 %v468, 1.442695
        %v486 = vpow.pop %v485
        %v487 = vmul.f32 %v469, 1.442695
        %v488 = vpow.pop %v487
        %v489 = vmul.f32 %v470, 1.442695
        %v490 = vpow.pop %v489
        %v491 = vld [vmem:[%s259] sm:$0xf]
        %v492 = vld [vmem:[%s259 + $0x4] sm:$0xf]
        %v493 = vld [vmem:[%s259 + $0x8] sm:$0xf]
        %v494 = vld [vmem:[%s259 + $0xc] sm:$0xf]
        %v495 = vld [vmem:[%s259 + $0x10] sm:$0xf]
        %v496 = vld [vmem:[%s259 + $0x14] sm:$0xf]
        %v497 = vld [vmem:[%s259 + $0x18] sm:$0xf]
        %v498 = vld [vmem:[%s259 + $0x1c] sm:$0xf]
        %v499 = vld [vmem:[%s259 + $0x20] sm:$0xf]
        %v500 = vld [vmem:[%s259 + $0x24] sm:$0xf]
        %v501 = vunpack.c.l.bf16 %v491
        %v502 = vunpack.c.l.bf16 %v492
        %v503 = vunpack.c.l.bf16 %v493
        %v504 = vunpack.c.l.bf16 %v494
        %v505 = vunpack.c.l.bf16 %v495
        %v506 = vunpack.c.l.bf16 %v496
        %v507 = vunpack.c.l.bf16 %v497
        %v508 = vunpack.c.l.bf16 %v498
        %v509 = vunpack.c.l.bf16 %v499
        %v510 = vunpack.c.l.bf16 %v500
        %v511 = vmul.f32 %v472, %v501
        %v512 = vmul.f32 %v474, %v502
        %v513 = vmul.f32 %v476, %v503
        %v514 = vmul.f32 %v478, %v504
        %v515 = vmul.f32 %v480, %v505
        %v516 = vmul.f32 %v482, %v506
        %v517 = vmul.f32 %v484, %v507
        %v518 = vmul.f32 %v486, %v508
        %v519 = vmul.f32 %v488, %v509
        %v520 = vmul.f32 %v490, %v510
        %v521 = vsel %vm430, %v511, 0.0
        %522 = vadd.xlane.f32.xlu0 %v521
        %v523 = vpop.xlane.xlu0 %522
        %v524 = vsel %vm430, %v512, 0.0
        %525 = vadd.xlane.f32.xlu0 %v524
        %v526 = vpop.xlane.xlu0 %525
        %v527 = vsel %vm430, %v513, 0.0
        %528 = vadd.xlane.f32.xlu0 %v527
        %v529 = vpop.xlane.xlu0 %528
        %v530 = vsel %vm430, %v514, 0.0
        %531 = vadd.xlane.f32.xlu0 %v530
        %v532 = vpop.xlane.xlu0 %531
        %v533 = vsel %vm430, %v515, 0.0
        %534 = vadd.xlane.f32.xlu0 %v533
        %v535 = vpop.xlane.xlu0 %534
        %v536 = vsel %vm430, %v516, 0.0
        %537 = vadd.xlane.f32.xlu0 %v536
        %v538 = vpop.xlane.xlu0 %537
        %v539 = vsel %vm430, %v517, 0.0
        %540 = vadd.xlane.f32.xlu0 %v539
        %v541 = vpop.xlane.xlu0 %540
        %v542 = vsel %vm430, %v518, 0.0
        %543 = vadd.xlane.f32.xlu0 %v542
        %v544 = vpop.xlane.xlu0 %543
        %v545 = vsel %vm430, %v519, 0.0
        %546 = vadd.xlane.f32.xlu0 %v545
        %v547 = vpop.xlane.xlu0 %546
        %v548 = vsel %vm430, %v520, 0.0
        %549 = vadd.xlane.f32.xlu0 %v548
        %v550 = vpop.xlane.xlu0 %549
        %v551 = vsel %vm430, %v472, 0.0
        %552 = vadd.xlane.f32.xlu0 %v551
        %v553 = vpop.xlane.xlu0 %552
        %v554 = vsel %vm430, %v474, 0.0
        %555 = vadd.xlane.f32.xlu0 %v554
        %v556 = vpop.xlane.xlu0 %555
        %v557 = vsel %vm430, %v476, 0.0
        %558 = vadd.xlane.f32.xlu0 %v557
        %v559 = vpop.xlane.xlu0 %558
        %v560 = vsel %vm430, %v478, 0.0
        %561 = vadd.xlane.f32.xlu0 %v560
        %v562 = vpop.xlane.xlu0 %561
        %v563 = vsel %vm430, %v480, 0.0
        %564 = vadd.xlane.f32.xlu0 %v563
        %v565 = vpop.xlane.xlu0 %564
        %v566 = vsel %vm430, %v482, 0.0
        %567 = vadd.xlane.f32.xlu0 %v566
        %v568 = vpop.xlane.xlu0 %567
        %v569 = vsel %vm430, %v484, 0.0
        %570 = vadd.xlane.f32.xlu0 %v569
        %v571 = vpop.xlane.xlu0 %570
        %v572 = vsel %vm430, %v486, 0.0
        %573 = vadd.xlane.f32.xlu0 %v572
        %v574 = vpop.xlane.xlu0 %573
        %v575 = vsel %vm430, %v488, 0.0
        %576 = vadd.xlane.f32.xlu0 %v575
        %v577 = vpop.xlane.xlu0 %576
        %v578 = vsel %vm430, %v490, 0.0
        %579 = vadd.xlane.f32.xlu0 %v578
        %v580 = vpop.xlane.xlu0 %579
        %v581 = vrcp.pop %v553
        %v582 = vmul.f32 %v523, %v581
        %v583 = vrcp.pop %v556
        %v584 = vmul.f32 %v526, %v583
        %v585 = vrcp.pop %v559
        %v586 = vmul.f32 %v529, %v585
        %v587 = vrcp.pop %v562
        %v588 = vmul.f32 %v532, %v587
        %v589 = vrcp.pop %v565
        %v590 = vmul.f32 %v535, %v589
        %v591 = vrcp.pop %v568
        %v592 = vmul.f32 %v538, %v591
        %v593 = vrcp.pop %v571
        %v594 = vmul.f32 %v541, %v593
        %v595 = vrcp.pop %v574
        %v596 = vmul.f32 %v544, %v595
        %v597 = vrcp.pop %v577
        %v598 = vmul.f32 %v547, %v597
        %v599 = vrcp.pop %v580
        %v600 = vmul.f32 %v550, %v599
        %vm601 = vcmask 7168
        %602 = vst.msk [vmem:[%s245] sm:$0xff] %vm601, %v582
        %603 = vst.msk [vmem:[%s245 + $0x8] sm:$0xff] %vm601, %v584
        %604 = vst.msk [vmem:[%s245 + $0x10] sm:$0xff] %vm601, %v586
        %605 = vst.msk [vmem:[%s245 + $0x18] sm:$0xff] %vm601, %v588
        %606 = vst.msk [vmem:[%s245 + $0x20] sm:$0xff] %vm601, %v590
        %607 = vst.msk [vmem:[%s245 + $0x28] sm:$0xff] %vm601, %v592
        %608 = vst.msk [vmem:[%s245 + $0x30] sm:$0xff] %vm601, %v594
        %609 = vst.msk [vmem:[%s245 + $0x38] sm:$0xff] %vm601, %v596
        %610 = vst.msk [vmem:[%s245 + $0x40] sm:$0xff] %vm601, %v598
        %611 = vst.msk [vmem:[%s245 + $0x48] sm:$0xff] %vm601, %v600
        %s612 = sand.u32 %s120, 1
        %s613 = sand.u32 %s120, 1
        %s614 = smul.addr %s613, 80
        %s615 = scalar_lea.vmem [#allocation4], %s614
        // Predicated region
        $region41: #{tpu_custom_call.1} parent=35 // pred_check
          %p616 = pneg %p130
        $region42: #{tpu_custom_call.1} parent=35 // pred_check_branch
          %618 = sbr.rel (%p616) target = $region44
        $region43: #{tpu_custom_call.1} parent=35 // pred_region
          %s619 = smul.u32 10, %s18
          %s620 = ssub.s32 38, %s619
          %p621 = scmp.lt.s32.totalorder %s620, 10
          %s622 = scalar_select %p621, %s620, 10
          %s623 = smul.u32 128, %s622
          %p624 = scmp.ne.s32.totalorder 0, %s623
          %s625 = smul.addr %s619, 8
          %s626 = scalar_lea.vmem %s4, %s625
          // Predicated region
          $region45: #{tpu_custom_call.1} parent=43 // pred_check
            %p627 = pneg %p624
          $region46: #{tpu_custom_call.1} parent=43 // pred_check_branch
            %629 = sbr.rel (%p627) target = $region48
          $region47: #{tpu_custom_call.1} parent=43 // pred_region
            // Predicated region
            $region49: #{tpu_custom_call.1} parent=47 // pred_check
              _
            $region50: #{tpu_custom_call.1} parent=47 // pred_check_branch
              %631 = sbr.rel (0) target = $region52
            $region51: #{tpu_custom_call.1} parent=47 // pred_region
              // Predicated region
              $region71: #{tpu_custom_call.1} parent=51 // pred_check
                _
              $region72: #{tpu_custom_call.1} parent=51 // pred_check_branch
                %699 = sbr.rel (0) target = $region74
              $region73: #{tpu_custom_call.1} parent=51 // pred_region
                %s700 = sdiv.u32.pop %s622, 10
                %s701 = srem.u32.pop %s622, 10
                // While loop
                $region75: #{tpu_custom_call.1} parent=73 // loop_pre_header
                  _
                $region76: #{tpu_custom_call.1} parent=73 // loop_header
                  %s703 = sphi 0, %s705
                  %p704 = scmp.ge.s32.totalorder %s703, %s700
                  %s708 = sphi 0, %s733
                  %s709 = sphi %s615, %s736
                  %s710 = sphi %s626, %s737
                $region77: #{tpu_custom_call.1} parent=73 // loop_header_branch
                  %707 = sbr.rel (%p704) target = $region81
                $region78: #{tpu_custom_call.1} parent=73 // loop_body
                  %v711 = vld [vmem:[%s709] sm:$0xff]
                  %712 = vst [vmem:[%s710] sm:$0xff] %v711
                  %v713 = vld [vmem:[%s709 + $0x8] sm:$0xff]
                  %714 = vst [vmem:[%s710 + $0x8] sm:$0xff] %v713
                  %v715 = vld [vmem:[%s709 + $0x10] sm:$0xff]
                  %716 = vst [vmem:[%s710 + $0x10] sm:$0xff] %v715
                  %v717 = vld [vmem:[%s709 + $0x18] sm:$0xff]
                  %718 = vst [vmem:[%s710 + $0x18] sm:$0xff] %v717
                  %v719 = vld [vmem:[%s709 + $0x20] sm:$0xff]
                  %720 = vst [vmem:[%s710 + $0x20] sm:$0xff] %v719
                  %v721 = vld [vmem:[%s709 + $0x28] sm:$0xff]
                  %722 = vst [vmem:[%s710 + $0x28] sm:$0xff] %v721
                  %v723 = vld [vmem:[%s709 + $0x30] sm:$0xff]
                  %724 = vst [vmem:[%s710 + $0x30] sm:$0xff] %v723
                  %v725 = vld [vmem:[%s709 + $0x38] sm:$0xff]
                  %726 = vst [vmem:[%s710 + $0x38] sm:$0xff] %v725
                  %v727 = vld [vmem:[%s709 + $0x40] sm:$0xff]
                  %728 = vst [vmem:[%s710 + $0x40] sm:$0xff] %v727
                  %v729 = vld [vmem:[%s709 + $0x48] sm:$0xff]
                  %730 = vst [vmem:[%s710 + $0x48] sm:$0xff] %v729
                  %s731 = sadd.s32 1, %s708
                  %p732 = scmp.ge.s32.totalorder %s731, %s700
                  %s733 = scalar_select %p732, 0, %s731
                  %s734 = smul.u32 %s733, 80
                  %s735 = smul.u32 %s733, 80
                  %s736 = scalar_lea.vmem %s615, %s734 [#allocation4]
                  %s737 = scalar_lea.vmem %s626, %s735
                $region79: #{tpu_custom_call.1} parent=73 // loop_footer
                  %s705 = sadd.s32 %s703, 1
                $region80: #{tpu_custom_call.1} parent=73 // loop_footer_branch
                  %702 = sbr.rel target = $region76
                $region81: #{tpu_custom_call.1} parent=73 // loop_exit
                  _
                %s738 = sdiv.u32.pop %s622, 10
                %s739 = srem.u32.pop %s622, 10
                %s740 = smul.u32 %s738, 10
                %s741 = smul.u32 8, %s740
                %s742 = scalar_lea.vmem %s615, %s741 [#allocation4]
                %s743 = smul.u32 8, %s740
                %s744 = scalar_lea.vmem %s626, %s743
                // While loop
                $region82: #{tpu_custom_call.1} parent=73 // loop_pre_header
                  _
                $region83: #{tpu_custom_call.1} parent=73 // loop_header
                  %s746 = sphi 0, %s748
                  %p747 = scmp.ge.s32.totalorder %s746, %s739
                  %s751 = sphi 0, %s758
                  %s752 = sphi %s742, %s761
                  %s753 = sphi %s744, %s762
                $region84: #{tpu_custom_call.1} parent=73 // loop_header_branch
                  %750 = sbr.rel (%p747) target = $region88
                $region85: #{tpu_custom_call.1} parent=73 // loop_body
                  %v754 = vld [vmem:[%s752] sm:$0xff]
                  %755 = vst [vmem:[%s753] sm:$0xff] %v754
                  %s756 = sadd.s32 1, %s751
                  %p757 = scmp.ge.s32.totalorder %s756, %s739
                  %s758 = scalar_select %p757, 0, %s756
                  %s759 = smul.u32 %s758, 8
                  %s760 = smul.u32 %s758, 8
                  %s761 = scalar_lea.vmem %s742, %s759 [#allocation4]
                  %s762 = scalar_lea.vmem %s744, %s760
                $region86: #{tpu_custom_call.1} parent=73 // loop_footer
                  %s748 = sadd.s32 %s746, 1
                $region87: #{tpu_custom_call.1} parent=73 // loop_footer_branch
                  %745 = sbr.rel target = $region83
                $region88: #{tpu_custom_call.1} parent=73 // loop_exit
                  _
              $region74: #{tpu_custom_call.1} parent=51 // pred_fallthru
                _
              // Predicated region
              $region89: #{tpu_custom_call.1} parent=51 // pred_check
                _
              $region90: #{tpu_custom_call.1} parent=51 // pred_check_branch
                %764 = sbr.rel target = $region92
              $region91: #{tpu_custom_call.1} parent=51 // pred_region
                _
              $region92: #{tpu_custom_call.1} parent=51 // pred_fallthru
                _
            $region52: #{tpu_custom_call.1} parent=47 // pred_fallthru
              _
            // Predicated region
            $region53: #{tpu_custom_call.1} parent=47 // pred_check
              _
            $region54: #{tpu_custom_call.1} parent=47 // pred_check_branch
              %633 = sbr.rel target = $region56
            $region55: #{tpu_custom_call.1} parent=47 // pred_region
              %s635 = sdiv.u32.pop %s622, 10
              %s636 = srem.u32.pop %s622, 10
              // While loop
              $region57: #{tpu_custom_call.1} parent=55 // loop_pre_header
                _
              $region58: #{tpu_custom_call.1} parent=55 // loop_header
                %s638 = sphi 0, %s640
                %p639 = scmp.ge.s32.totalorder %s638, %s635
                %s643 = sphi 0, %s668
                %s644 = sphi %s615, %s671
                %s645 = sphi %s626, %s672
              $region59: #{tpu_custom_call.1} parent=55 // loop_header_branch
                %642 = sbr.rel (%p639) target = $region63
              $region60: #{tpu_custom_call.1} parent=55 // loop_body
                %v646 = vld [vmem:[%s644] sm:$0xff]
                %647 = vst [vmem:[%s645] sm:$0xff] %v646
                %v648 = vld [vmem:[%s644 + $0x8] sm:$0xff]
                %649 = vst [vmem:[%s645 + $0x8] sm:$0xff] %v648
                %v650 = vld [vmem:[%s644 + $0x10] sm:$0xff]
                %651 = vst [vmem:[%s645 + $0x10] sm:$0xff] %v650
                %v652 = vld [vmem:[%s644 + $0x18] sm:$0xff]
                %653 = vst [vmem:[%s645 + $0x18] sm:$0xff] %v652
                %v654 = vld [vmem:[%s644 + $0x20] sm:$0xff]
                %655 = vst [vmem:[%s645 + $0x20] sm:$0xff] %v654
                %v656 = vld [vmem:[%s644 + $0x28] sm:$0xff]
                %657 = vst [vmem:[%s645 + $0x28] sm:$0xff] %v656
                %v658 = vld [vmem:[%s644 + $0x30] sm:$0xff]
                %659 = vst [vmem:[%s645 + $0x30] sm:$0xff] %v658
                %v660 = vld [vmem:[%s644 + $0x38] sm:$0xff]
                %661 = vst [vmem:[%s645 + $0x38] sm:$0xff] %v660
                %v662 = vld [vmem:[%s644 + $0x40] sm:$0xff]
                %663 = vst [vmem:[%s645 + $0x40] sm:$0xff] %v662
                %v664 = vld [vmem:[%s644 + $0x48] sm:$0xff]
                %665 = vst [vmem:[%s645 + $0x48] sm:$0xff] %v664
                %s666 = sadd.s32 1, %s643
                %p667 = scmp.ge.s32.totalorder %s666, %s635
                %s668 = scalar_select %p667, 0, %s666
                %s669 = smul.u32 %s668, 80
                %s670 = smul.u32 %s668, 80
                %s671 = scalar_lea.vmem %s615, %s669 [#allocation4]
                %s672 = scalar_lea.vmem %s626, %s670
              $region61: #{tpu_custom_call.1} parent=55 // loop_footer
                %s640 = sadd.s32 %s638, 1
              $region62: #{tpu_custom_call.1} parent=55 // loop_footer_branch
                %637 = sbr.rel target = $region58
              $region63: #{tpu_custom_call.1} parent=55 // loop_exit
                _
              %s673 = sdiv.u32.pop %s622, 10
              %s674 = srem.u32.pop %s622, 10
              %s675 = smul.u32 %s673, 10
              %s676 = smul.u32 8, %s675
              %s677 = scalar_lea.vmem %s615, %s676 [#allocation4]
              %s678 = smul.u32 8, %s675
              %s679 = scalar_lea.vmem %s626, %s678
              // While loop
              $region64: #{tpu_custom_call.1} parent=55 // loop_pre_header
                _
              $region65: #{tpu_custom_call.1} parent=55 // loop_header
                %s681 = sphi 0, %s683
                %p682 = scmp.ge.s32.totalorder %s681, %s674
                %s686 = sphi 0, %s693
                %s687 = sphi %s677, %s696
                %s688 = sphi %s679, %s697
              $region66: #{tpu_custom_call.1} parent=55 // loop_header_branch
                %685 = sbr.rel (%p682) target = $region70
              $region67: #{tpu_custom_call.1} parent=55 // loop_body
                %v689 = vld [vmem:[%s687] sm:$0xff]
                %690 = vst [vmem:[%s688] sm:$0xff] %v689
                %s691 = sadd.s32 1, %s686
                %p692 = scmp.ge.s32.totalorder %s691, %s674
                %s693 = scalar_select %p692, 0, %s691
                %s694 = smul.u32 %s693, 8
                %s695 = smul.u32 %s693, 8
                %s696 = scalar_lea.vmem %s677, %s694 [#allocation4]
                %s697 = scalar_lea.vmem %s679, %s695
              $region68: #{tpu_custom_call.1} parent=55 // loop_footer
                %s683 = sadd.s32 %s681, 1
              $region69: #{tpu_custom_call.1} parent=55 // loop_footer_branch
                %680 = sbr.rel target = $region65
              $region70: #{tpu_custom_call.1} parent=55 // loop_exit
                _
            $region56: #{tpu_custom_call.1} parent=47 // pred_fallthru
              _
          $region48: #{tpu_custom_call.1} parent=43 // pred_fallthru
            _
          %765 = vnop
        $region44: #{tpu_custom_call.1} parent=35 // pred_fallthru
          _
      $region36: #{tpu_custom_call.1} parent=5 // pred_fallthru
        _
      %p766 = scmp.le.s32.totalorder 2, %s13
      // Predicated region
      $region93: #{tpu_custom_call.1} parent=5 // pred_check
        %p767 = pneg %p766
      $region94: #{tpu_custom_call.1} parent=5 // pred_check_branch
        %769 = sbr.rel (%p767) target = $region96
      $region95: #{tpu_custom_call.1} parent=5 // pred_region
        %s770 = ssub.s32 %s13, 2
        // Predicated region
        $region97: #{tpu_custom_call.1} parent=95 // pred_check
          %p771 = pneg %p136
        $region98: #{tpu_custom_call.1} parent=95 // pred_check_branch
          %773 = sbr.rel (%p771) target = $region100
        $region99: #{tpu_custom_call.1} parent=95 // pred_region
          %s774 = sand.u32 %s121, 1
          %s775 = sand.u32 %s121, 1
          %s776 = smul.addr %s775, 80
          %s777 = scalar_lea.vmem [#allocation4], %s776
        $region100: #{tpu_custom_call.1} parent=95 // pred_fallthru
          _
      $region96: #{tpu_custom_call.1} parent=5 // pred_fallthru
        _
    $region6: #{tpu_custom_call.1} parent=1 // loop_footer
      %s17 = sadd.s32 1, %s13
    $region7: #{tpu_custom_call.1} parent=1 // loop_footer_branch
      %12 = sbr.rel target = $region3
    $region8: #{tpu_custom_call.1} parent=1 // loop_exit
      _
    %778 = vsyncpa [#allocation3], 1
    %s779 = scalar_lea.sflag [#allocation3], 1
    %780 = vsyncpa %s779, 1

</llo_original>
